<compile_context>
chip_gen: v7x
topology: tpu7x:2x2x1
jax: 0.10.0
libtpu: 0.0.40
codegen_flags: <defaults>
</compile_context>

<pallas_src>
import math

import jax
import jax.numpy as jnp
from jax import lax
from jax.experimental import pallas as pl
from jax.experimental.pallas import tpu as pltpu


def _make_fused_conv_kernel(N, Cp, Cout, H, Wp, P):
    L = H * Wp                 # per-image flattened (padded-row) output length
    NL = N * L
    offsets = [dy * Wp + dx for dy in range(3) for dx in range(3)]

    def kernel(x_ref, wc_ref, bc_ref, out_ref, slab_ref):
        # x_ref   : (N, Cp, P)      zero-padded images, rows flattened, Cp channels
        # wc_ref  : (Cout, 9*Cp)    fused 3x3 weights, column = tap*Cp + c
        # bc_ref  : (Cout, 1)       fused bias
        # out_ref : (N, Cout, L)    channels-first output, padded-row layout
        # slab_ref: (9*Cp, N*L)     im2col scratch (VMEM)

        # ---- one-pass im2col: each shifted tap slab is built exactly once ----
        # (loads are lane-shifted; stores are fully aligned: sublane offset t*Cp
        #  is a multiple of 8, lane offset n*L is a multiple of 128)
        for t, off in enumerate(offsets):
            for n in range(N):
                slab_ref[t * Cp:(t + 1) * Cp, n * L:(n + 1) * L] = (
                    x_ref[n, :, pl.ds(off, L)]
                )

        # ---- single MXU contraction + bias ----
        acc = jnp.dot(wc_ref[...], slab_ref[...],
                      preferred_element_type=jnp.float32)        # (Cout, N*L)
        acc = acc + bc_ref[...].astype(jnp.float32)              # broadcast (Cout,1)

        # ---- lane-dense stores; n*L is 128-aligned so slicing acc is free ----
        for n in range(N):
            out_ref[n] = acc[:, n * L:(n + 1) * L].astype(out_ref.dtype)

    return kernel


def depthwise_separable_conv(x_nchw, dw_w, dw_b, pw_w, pw_b, kernels_per_layer):
    """x_nchw: (N, Cin, H, W); dw_w: (Cin*K, 1, 3, 3); dw_b: (Cin*K,)
    pw_w: (Cout, Cin*K, 1, 1); pw_b: (Cout,). Returns (N, Cout, H, W)."""
    N, Cin, H, W = x_nchw.shape
    K = kernels_per_layer
    Cout = pw_w.shape[0]

    # Padded row stride: smallest Wp >= W+2 such that H*Wp is a multiple of 128
    # (lane-dense output stores). Fall back to minimal padding if H is awkward.
    mult = 128 // math.gcd(H, 128)
    Wp = ((W + 2 + mult - 1) // mult) * mult
    if Wp > 2 * (W + 2):
        Wp = W + 2
    L = H * Wp
    P = (H + 3) * Wp           # +1 top row, +2 bottom rows keep every tap slab in bounds

    # Pad channels to the f32 sublane tile so im2col scratch writes are aligned.
    Cp = ((Cin + 7) // 8) * 8

    # ---- fold depthwise(3x3, groups=Cin, mult K) + pointwise(1x1) exactly ----
    wdw = dw_w[:, 0, :, :].reshape(Cin, K, 9)                  # (Cin, K, 9), tap = dy*3+dx
    wpw = pw_w[:, :, 0, 0]                                     # (Cout, Cin*K)
    wpw_r = wpw.reshape(Cout, Cin, K)                          # (Cout, Cin, K)
    wc = jnp.einsum("ock,ckt->otc", wpw_r, wdw)                # (Cout, 9, Cin)
    wc = jnp.pad(wc, ((0, 0), (0, 0), (0, Cp - Cin)))          # zero weights on pad ch.
    wc = wc.reshape(Cout, 9 * Cp).astype(jnp.float32)
    bc = (wpw @ dw_b + pw_b).reshape(Cout, 1).astype(jnp.float32)

    # ---- spatial 'same' padding baked into the row stride; zero pad channels ----
    xpad = jnp.pad(x_nchw, ((0, 0), (0, Cp - Cin), (1, 2), (1, Wp - W - 1)))
    xflat = xpad.reshape(N, Cp, P).astype(jnp.float32)         # contiguous reshape

    kernel = _make_fused_conv_kernel(N, Cp, Cout, H, Wp, P)
    out_flat = pl.pallas_call(
        kernel,
        out_shape=jax.ShapeDtypeStruct((N, Cout, L), x_nchw.dtype),
        grid=(1,),
        in_specs=[
            pl.BlockSpec((N, Cp, P), lambda i: (0, 0, 0)),
            pl.BlockSpec((Cout, 9 * Cp), lambda i: (0, 0)),
            pl.BlockSpec((Cout, 1), lambda i: (0, 0)),
        ],
        out_specs=pl.BlockSpec((N, Cout, L), lambda i: (0, 0, 0)),
        scratch_shapes=[pltpu.VMEM((9 * Cp, N * L), jnp.float32)],
        compiler_params=pltpu.CompilerParams(
            dimension_semantics=("arbitrary",)),
    )(xflat, wc, bc)

    # Already channels-first; just drop the padded columns of each row.
    out = out_flat.reshape(N, Cout, H, Wp)[:, :, :, :W]
    return out


def _reference(x_nchw, dw_w, dw_b, pw_w, pw_b, Cin):
    """Pure-JAX reference using lax convs (matches torch Conv2d semantics)."""
    dn = ("NCHW", "OIHW", "NCHW")
    dw = lax.conv_general_dilated(
        x_nchw, dw_w, window_strides=(1, 1), padding="SAME",
        feature_group_count=Cin, dimension_numbers=dn,
    ) + dw_b[None, :, None, None]
    pw = lax.conv_general_dilated(
        dw, pw_w, window_strides=(1, 1), padding="SAME",
        dimension_numbers=dn,
    ) + pw_b[None, :, None, None]
    return pw


if __name__ == "__main__":
    # Module config: nin=4, kernels_per_layer=2, nout=8
    nin, K, nout = 4, 2, 8
    N, H, W = 2, 16, 16
    Cm = nin * K

    key = jax.random.PRNGKey(0)
    k_x, k_dw, k_db, k_pw, k_pb = jax.random.split(key, 5)

    x = jax.random.normal(k_x, (N, nin, H, W), jnp.float32)
    # PyTorch parameter shapes:
    #   depthwise.weight: (nin*K, 1, 3, 3), depthwise.bias: (nin*K,)
    #   pointwise.weight: (nout, nin*K, 1, 1), pointwise.bias: (nout,)
    dw_w = jax.random.normal(k_dw, (Cm, 1, 3, 3), jnp.float32) * 0.2
    dw_b = jax.random.normal(k_db, (Cm,), jnp.float32) * 0.1
    pw_w = jax.random.normal(k_pw, (nout, Cm, 1, 1), jnp.float32) * 0.2
    pw_b = jax.random.normal(k_pb, (nout,), jnp.float32) * 0.1

    fwd = jax.jit(depthwise_separable_conv, static_argnames=("kernels_per_layer",))
    out = fwd(x, dw_w, dw_b, pw_w, pw_b, kernels_per_layer=K)
    out = jax.block_until_ready(out)

    ref = jax.block_until_ready(_reference(x, dw_w, dw_b, pw_w, pw_b, nin))
    assert out.shape == (N, nout, H, W), out.shape
    assert jnp.allclose(out, ref, atol=1e-4, rtol=1e-4), (
        float(jnp.max(jnp.abs(out - ref))))

    print("KERNEL_OK")
</pallas_src>

<mosaic_0001>
module attributes {stable_mosaic.version = 11 : i64} {
  func.func @kernel(%arg0: i32, %arg1: memref<2x8x456xf32, #tpu.memory_space<vmem>>, %arg2: memref<8x72xf32, #tpu.memory_space<vmem>>, %arg3: memref<8x1xf32, #tpu.memory_space<vmem>>, %arg4: memref<2x8x384xf32, #tpu.memory_space<vmem>>, %arg5: memref<72x768xf32, #tpu.memory_space<vmem>>) attributes {dimension_semantics = [#tpu.dimension_semantics<arbitrary>], iteration_bounds = array<i64: 1>, scalar_prefetch = 0 : i64, scratch_operands = 1 : i64, tpu.core_type = #tpu.core_type<tc>, window_params = [{pipeline_mode = #tpu.pipeline_mode<synchronous>, transform_indices = @transform_0, window_bounds = array<i64: 2, 8, 456>}, {pipeline_mode = #tpu.pipeline_mode<synchronous>, transform_indices = @transform_1, window_bounds = array<i64: 8, 72>}, {pipeline_mode = #tpu.pipeline_mode<synchronous>, transform_indices = @transform_2, window_bounds = array<i64: 8, 1>}, {pipeline_mode = #tpu.pipeline_mode<synchronous>, transform_indices = @transform_3, window_bounds = array<i64: 2, 8, 384>}]} {
    %c0 = arith.constant 0 : index
    %c0_0 = arith.constant 0 : index
    %c0_1 = arith.constant 0 : index
    %0 = vector.load %arg1[%c0, %c0_0, %c0_1] : memref<2x8x456xf32, #tpu.memory_space<vmem>>, vector<1x8x384xf32>
    %1 = vector.shape_cast %0 : vector<1x8x384xf32> to vector<8x384xf32>
    %c0_2 = arith.constant 0 : index
    %c0_3 = arith.constant 0 : index
    %2 = vector.load %arg5[%c0_2, %c0_3] : memref<72x768xf32, #tpu.memory_space<vmem>>, vector<8x384xf32>
    tpu.vector_store %arg5[%c0_2, %c0_3], %1 {strides = array<i32>} : memref<72x768xf32, #tpu.memory_space<vmem>>, vector<8x384xf32>,
    %c1 = arith.constant 1 : index
    %c0_4 = arith.constant 0 : index
    %c0_5 = arith.constant 0 : index
    %3 = vector.load %arg1[%c1, %c0_4, %c0_5] : memref<2x8x456xf32, #tpu.memory_space<vmem>>, vector<1x8x384xf32>
    %4 = vector.shape_cast %3 : vector<1x8x384xf32> to vector<8x384xf32>
    %c0_6 = arith.constant 0 : index
    %c384 = arith.constant 384 : index
    %5 = vector.load %arg5[%c0_6, %c384] : memref<72x768xf32, #tpu.memory_space<vmem>>, vector<8x384xf32>
    tpu.vector_store %arg5[%c0_6, %c384], %4 {strides = array<i32>} : memref<72x768xf32, #tpu.memory_space<vmem>>, vector<8x384xf32>,
    %c0_7 = arith.constant 0 : index
    %c0_8 = arith.constant 0 : index
    %c1_9 = arith.constant 1 : index
    %6 = vector.load %arg1[%c0_7, %c0_8, %c1_9] : memref<2x8x456xf32, #tpu.memory_space<vmem>>, vector<1x8x384xf32>
    %7 = vector.shape_cast %6 : vector<1x8x384xf32> to vector<8x384xf32>
    %c8 = arith.constant 8 : index
    %c0_10 = arith.constant 0 : index
    %8 = vector.load %arg5[%c8, %c0_10] : memref<72x768xf32, #tpu.memory_space<vmem>>, vector<8x384xf32>
    tpu.vector_store %arg5[%c8, %c0_10], %7 {strides = array<i32>} : memref<72x768xf32, #tpu.memory_space<vmem>>, vector<8x384xf32>,
    %c1_11 = arith.constant 1 : index
    %c0_12 = arith.constant 0 : index
    %c1_13 = arith.constant 1 : index
    %9 = vector.load %arg1[%c1_11, %c0_12, %c1_13] : memref<2x8x456xf32, #tpu.memory_space<vmem>>, vector<1x8x384xf32>
    %10 = vector.shape_cast %9 : vector<1x8x384xf32> to vector<8x384xf32>
    %c8_14 = arith.constant 8 : index
    %c384_15 = arith.constant 384 : index
    %11 = vector.load %arg5[%c8_14, %c384_15] : memref<72x768xf32, #tpu.memory_space<vmem>>, vector<8x384xf32>
    tpu.vector_store %arg5[%c8_14, %c384_15], %10 {strides = array<i32>} : memref<72x768xf32, #tpu.memory_space<vmem>>, vector<8x384xf32>,
    %c0_16 = arith.constant 0 : index
    %c0_17 = arith.constant 0 : index
    %c2 = arith.constant 2 : index
    %12 = vector.load %arg1[%c0_16, %c0_17, %c2] : memref<2x8x456xf32, #tpu.memory_space<vmem>>, vector<1x8x384xf32>
    %13 = vector.shape_cast %12 : vector<1x8x384xf32> to vector<8x384xf32>
    %c16 = arith.constant 16 : index
    %c0_18 = arith.constant 0 : index
    %14 = vector.load %arg5[%c16, %c0_18] : memref<72x768xf32, #tpu.memory_space<vmem>>, vector<8x384xf32>
    tpu.vector_store %arg5[%c16, %c0_18], %13 {strides = array<i32>} : memref<72x768xf32, #tpu.memory_space<vmem>>, vector<8x384xf32>,
    %c1_19 = arith.constant 1 : index
    %c0_20 = arith.constant 0 : index
    %c2_21 = arith.constant 2 : index
    %15 = vector.load %arg1[%c1_19, %c0_20, %c2_21] : memref<2x8x456xf32, #tpu.memory_space<vmem>>, vector<1x8x384xf32>
    %16 = vector.shape_cast %15 : vector<1x8x384xf32> to vector<8x384xf32>
    %c16_22 = arith.constant 16 : index
    %c384_23 = arith.constant 384 : index
    %17 = vector.load %arg5[%c16_22, %c384_23] : memref<72x768xf32, #tpu.memory_space<vmem>>, vector<8x384xf32>
    tpu.vector_store %arg5[%c16_22, %c384_23], %16 {strides = array<i32>} : memref<72x768xf32, #tpu.memory_space<vmem>>, vector<8x384xf32>,
    %c0_24 = arith.constant 0 : index
    %c0_25 = arith.constant 0 : index
    %c24 = arith.constant 24 : index
    %18 = vector.load %arg1[%c0_24, %c0_25, %c24] : memref<2x8x456xf32, #tpu.memory_space<vmem>>, vector<1x8x384xf32>
    %19 = vector.shape_cast %18 : vector<1x8x384xf32> to vector<8x384xf32>
    %c24_26 = arith.constant 24 : index
    %c0_27 = arith.constant 0 : index
    %20 = vector.load %arg5[%c24_26, %c0_27] : memref<72x768xf32, #tpu.memory_space<vmem>>, vector<8x384xf32>
    tpu.vector_store %arg5[%c24_26, %c0_27], %19 {strides = array<i32>} : memref<72x768xf32, #tpu.memory_space<vmem>>, vector<8x384xf32>,
    %c1_28 = arith.constant 1 : index
    %c0_29 = arith.constant 0 : index
    %c24_30 = arith.constant 24 : index
    %21 = vector.load %arg1[%c1_28, %c0_29, %c24_30] : memref<2x8x456xf32, #tpu.memory_space<vmem>>, vector<1x8x384xf32>
    %22 = vector.shape_cast %21 : vector<1x8x384xf32> to vector<8x384xf32>
    %c24_31 = arith.constant 24 : index
    %c384_32 = arith.constant 384 : index
    %23 = vector.load %arg5[%c24_31, %c384_32] : memref<72x768xf32, #tpu.memory_space<vmem>>, vector<8x384xf32>
    tpu.vector_store %arg5[%c24_31, %c384_32], %22 {strides = array<i32>} : memref<72x768xf32, #tpu.memory_space<vmem>>, vector<8x384xf32>,
    %c0_33 = arith.constant 0 : index
    %c0_34 = arith.constant 0 : index
    %c25 = arith.constant 25 : index
    %24 = vector.load %arg1[%c0_33, %c0_34, %c25] : memref<2x8x456xf32, #tpu.memory_space<vmem>>, vector<1x8x384xf32>
    %25 = vector.shape_cast %24 : vector<1x8x384xf32> to vector<8x384xf32>
    %c32 = arith.constant 32 : index
    %c0_35 = arith.constant 0 : index
    %26 = vector.load %arg5[%c32, %c0_35] : memref<72x768xf32, #tpu.memory_space<vmem>>, vector<8x384xf32>
    tpu.vector_store %arg5[%c32, %c0_35], %25 {strides = array<i32>} : memref<72x768xf32, #tpu.memory_space<vmem>>, vector<8x384xf32>,
    %c1_36 = arith.constant 1 : index
    %c0_37 = arith.constant 0 : index
    %c25_38 = arith.constant 25 : index
    %27 = vector.load %arg1[%c1_36, %c0_37, %c25_38] : memref<2x8x456xf32, #tpu.memory_space<vmem>>, vector<1x8x384xf32>
    %28 = vector.shape_cast %27 : vector<1x8x384xf32> to vector<8x384xf32>
    %c32_39 = arith.constant 32 : index
    %c384_40 = arith.constant 384 : index
    %29 = vector.load %arg5[%c32_39, %c384_40] : memref<72x768xf32, #tpu.memory_space<vmem>>, vector<8x384xf32>
    tpu.vector_store %arg5[%c32_39, %c384_40], %28 {strides = array<i32>} : memref<72x768xf32, #tpu.memory_space<vmem>>, vector<8x384xf32>,
    %c0_41 = arith.constant 0 : index
    %c0_42 = arith.constant 0 : index
    %c26 = arith.constant 26 : index
    %30 = vector.load %arg1[%c0_41, %c0_42, %c26] : memref<2x8x456xf32, #tpu.memory_space<vmem>>, vector<1x8x384xf32>
    %31 = vector.shape_cast %30 : vector<1x8x384xf32> to vector<8x384xf32>
    %c40 = arith.constant 40 : index
    %c0_43 = arith.constant 0 : index
    %32 = vector.load %arg5[%c40, %c0_43] : memref<72x768xf32, #tpu.memory_space<vmem>>, vector<8x384xf32>
    tpu.vector_store %arg5[%c40, %c0_43], %31 {strides = array<i32>} : memref<72x768xf32, #tpu.memory_space<vmem>>, vector<8x384xf32>,
    %c1_44 = arith.constant 1 : index
    %c0_45 = arith.constant 0 : index
    %c26_46 = arith.constant 26 : index
    %33 = vector.load %arg1[%c1_44, %c0_45, %c26_46] : memref<2x8x456xf32, #tpu.memory_space<vmem>>, vector<1x8x384xf32>
    %34 = vector.shape_cast %33 : vector<1x8x384xf32> to vector<8x384xf32>
    %c40_47 = arith.constant 40 : index
    %c384_48 = arith.constant 384 : index
    %35 = vector.load %arg5[%c40_47, %c384_48] : memref<72x768xf32, #tpu.memory_space<vmem>>, vector<8x384xf32>
    tpu.vector_store %arg5[%c40_47, %c384_48], %34 {strides = array<i32>} : memref<72x768xf32, #tpu.memory_space<vmem>>, vector<8x384xf32>,
    %c0_49 = arith.constant 0 : index
    %c0_50 = arith.constant 0 : index
    %c48 = arith.constant 48 : index
    %36 = vector.load %arg1[%c0_49, %c0_50, %c48] : memref<2x8x456xf32, #tpu.memory_space<vmem>>, vector<1x8x384xf32>
    %37 = vector.shape_cast %36 : vector<1x8x384xf32> to vector<8x384xf32>
    %c48_51 = arith.constant 48 : index
    %c0_52 = arith.constant 0 : index
    %38 = vector.load %arg5[%c48_51, %c0_52] : memref<72x768xf32, #tpu.memory_space<vmem>>, vector<8x384xf32>
    tpu.vector_store %arg5[%c48_51, %c0_52], %37 {strides = array<i32>} : memref<72x768xf32, #tpu.memory_space<vmem>>, vector<8x384xf32>,
    %c1_53 = arith.constant 1 : index
    %c0_54 = arith.constant 0 : index
    %c48_55 = arith.constant 48 : index
    %39 = vector.load %arg1[%c1_53, %c0_54, %c48_55] : memref<2x8x456xf32, #tpu.memory_space<vmem>>, vector<1x8x384xf32>
    %40 = vector.shape_cast %39 : vector<1x8x384xf32> to vector<8x384xf32>
    %c48_56 = arith.constant 48 : index
    %c384_57 = arith.constant 384 : index
    %41 = vector.load %arg5[%c48_56, %c384_57] : memref<72x768xf32, #tpu.memory_space<vmem>>, vector<8x384xf32>
    tpu.vector_store %arg5[%c48_56, %c384_57], %40 {strides = array<i32>} : memref<72x768xf32, #tpu.memory_space<vmem>>, vector<8x384xf32>,
    %c0_58 = arith.constant 0 : index
    %c0_59 = arith.constant 0 : index
    %c49 = arith.constant 49 : index
    %42 = vector.load %arg1[%c0_58, %c0_59, %c49] : memref<2x8x456xf32, #tpu.memory_space<vmem>>, vector<1x8x384xf32>
    %43 = vector.shape_cast %42 : vector<1x8x384xf32> to vector<8x384xf32>
    %c56 = arith.constant 56 : index
    %c0_60 = arith.constant 0 : index
    %44 = vector.load %arg5[%c56, %c0_60] : memref<72x768xf32, #tpu.memory_space<vmem>>, vector<8x384xf32>
    tpu.vector_store %arg5[%c56, %c0_60], %43 {strides = array<i32>} : memref<72x768xf32, #tpu.memory_space<vmem>>, vector<8x384xf32>,
    %c1_61 = arith.constant 1 : index
    %c0_62 = arith.constant 0 : index
    %c49_63 = arith.constant 49 : index
    %45 = vector.load %arg1[%c1_61, %c0_62, %c49_63] : memref<2x8x456xf32, #tpu.memory_space<vmem>>, vector<1x8x384xf32>
    %46 = vector.shape_cast %45 : vector<1x8x384xf32> to vector<8x384xf32>
    %c56_64 = arith.constant 56 : index
    %c384_65 = arith.constant 384 : index
    %47 = vector.load %arg5[%c56_64, %c384_65] : memref<72x768xf32, #tpu.memory_space<vmem>>, vector<8x384xf32>
    tpu.vector_store %arg5[%c56_64, %c384_65], %46 {strides = array<i32>} : memref<72x768xf32, #tpu.memory_space<vmem>>, vector<8x384xf32>,
    %c0_66 = arith.constant 0 : index
    %c0_67 = arith.constant 0 : index
    %c50 = arith.constant 50 : index
    %48 = vector.load %arg1[%c0_66, %c0_67, %c50] : memref<2x8x456xf32, #tpu.memory_space<vmem>>, vector<1x8x384xf32>
    %49 = vector.shape_cast %48 : vector<1x8x384xf32> to vector<8x384xf32>
    %c64 = arith.constant 64 : index
    %c0_68 = arith.constant 0 : index
    %50 = vector.load %arg5[%c64, %c0_68] : memref<72x768xf32, #tpu.memory_space<vmem>>, vector<8x384xf32>
    tpu.vector_store %arg5[%c64, %c0_68], %49 {strides = array<i32>} : memref<72x768xf32, #tpu.memory_space<vmem>>, vector<8x384xf32>,
    %c1_69 = arith.constant 1 : index
    %c0_70 = arith.constant 0 : index
    %c50_71 = arith.constant 50 : index
    %51 = vector.load %arg1[%c1_69, %c0_70, %c50_71] : memref<2x8x456xf32, #tpu.memory_space<vmem>>, vector<1x8x384xf32>
    %52 = vector.shape_cast %51 : vector<1x8x384xf32> to vector<8x384xf32>
    %c64_72 = arith.constant 64 : index
    %c384_73 = arith.constant 384 : index
    %53 = vector.load %arg5[%c64_72, %c384_73] : memref<72x768xf32, #tpu.memory_space<vmem>>, vector<8x384xf32>
    tpu.vector_store %arg5[%c64_72, %c384_73], %52 {strides = array<i32>} : memref<72x768xf32, #tpu.memory_space<vmem>>, vector<8x384xf32>,
    %c0_74 = arith.constant 0 : index
    %c0_75 = arith.constant 0 : index
    %54 = vector.load %arg2[%c0_74, %c0_75] : memref<8x72xf32, #tpu.memory_space<vmem>>, vector<8x72xf32>
    %c0_76 = arith.constant 0 : index
    %c0_77 = arith.constant 0 : index
    %55 = vector.load %arg5[%c0_76, %c0_77] : memref<72x768xf32, #tpu.memory_space<vmem>>, vector<72x768xf32>
    %cst = arith.constant dense<0.000000e+00> : vector<8x768xf32>
    %56 = tpu.matmul %54, %55, %cst {dimension_numbers = #tpu.dot_dimension_numbers<[1], [0], [0], [1], [0, 0, 1, 1], [], []>} : vector<8x72xf32>, vector<72x768xf32>, vector<8x768xf32> -> vector<8x768xf32>
    %c0_78 = arith.constant 0 : index
    %c0_79 = arith.constant 0 : index
    %57 = vector.load %arg3[%c0_78, %c0_79] : memref<8x1xf32, #tpu.memory_space<vmem>>, vector<8x1xf32>
    %58 = vector.broadcast %57 : vector<8x1xf32> to vector<8x768xf32>
    %59 = arith.addf %56, %58 : vector<8x768xf32>
    %60 = vector.extract_strided_slice %59 {offsets = [0, 0], sizes = [8, 384], strides = [1, 1]} : vector<8x768xf32> to vector<8x384xf32>
    %c0_80 = arith.constant 0 : index
    %c0_81 = arith.constant 0 : index
    %c0_82 = arith.constant 0 : index
    %61 = vector.load %arg4[%c0_80, %c0_81, %c0_82] : memref<2x8x384xf32, #tpu.memory_space<vmem>>, vector<1x8x384xf32>
    %62 = vector.shape_cast %61 : vector<1x8x384xf32> to vector<8x384xf32>
    %63 = vector.shape_cast %60 : vector<8x384xf32> to vector<1x8x384xf32>
    tpu.vector_store %arg4[%c0_80, %c0_81, %c0_82], %63 {strides = array<i32>} : memref<2x8x384xf32, #tpu.memory_space<vmem>>, vector<1x8x384xf32>,
    %64 = vector.extract_strided_slice %59 {offsets = [0, 384], sizes = [8, 384], strides = [1, 1]} : vector<8x768xf32> to vector<8x384xf32>
    %c1_83 = arith.constant 1 : index
    %c0_84 = arith.constant 0 : index
    %c0_85 = arith.constant 0 : index
    %65 = vector.load %arg4[%c1_83, %c0_84, %c0_85] : memref<2x8x384xf32, #tpu.memory_space<vmem>>, vector<1x8x384xf32>
    %66 = vector.shape_cast %65 : vector<1x8x384xf32> to vector<8x384xf32>
    %67 = vector.shape_cast %64 : vector<8x384xf32> to vector<1x8x384xf32>
    tpu.vector_store %arg4[%c1_83, %c0_84, %c0_85], %67 {strides = array<i32>} : memref<2x8x384xf32, #tpu.memory_space<vmem>>, vector<1x8x384xf32>,
    return
  }
  func.func @transform_0(%arg0: i32) -> (i32, i32, i32) {
    %c0_i32 = arith.constant 0 : i32
    %c0_i32_0 = arith.constant 0 : i32
    %c0_i32_1 = arith.constant 0 : i32
    %c0_i32_2 = arith.constant 0 : i32
    return %c0_i32, %c0_i32_0, %c0_i32_1 : i32, i32, i32
  }
  func.func @transform_1(%arg0: i32) -> (i32, i32) {
    %c0_i32 = arith.constant 0 : i32
    %c0_i32_0 = arith.constant 0 : i32
    %c0_i32_1 = arith.constant 0 : i32
    return %c0_i32, %c0_i32_0 : i32, i32
  }
  func.func @transform_2(%arg0: i32) -> (i32, i32) {
    %c0_i32 = arith.constant 0 : i32
    %c0_i32_0 = arith.constant 0 : i32
    %c0_i32_1 = arith.constant 0 : i32
    return %c0_i32, %c0_i32_0 : i32, i32
  }
  func.func @transform_3(%arg0: i32) -> (i32, i32, i32) {
    %c0_i32 = arith.constant 0 : i32
    %c0_i32_0 = arith.constant 0 : i32
    %c0_i32_1 = arith.constant 0 : i32
    %c0_i32_2 = arith.constant 0 : i32
    return %c0_i32, %c0_i32_0, %c0_i32_1 : i32, i32, i32
  }
}

</mosaic_0001>

<llo_original>
// kernel: depthwise_separable_conv.1
$region0: #{depthwise_separable_conv.1}
  #allocation0 [shape = 'u32[]', space=smem, size = 0x4, offset = 0x4, fixed_abs, tag = 'smem constant byte address 0x4 - core index']
  #allocation1 [shape = 'u32[144,128]{1,0:T(1,128)}', space=vmem, size = 0x12000, scoped, tag = 'internal scratch']
  #allocation2 [shape = 'f32[72,768]{1,0:T(8,128)}', space=vmem, size = 0x36000, scoped, tag = 'scratch operand']
  %s0 = inlined_call_operand.vmem [shape: f32[2,8,456], index: 0, kind: input, shape index: {}]
  %s1 = inlined_call_operand.vmem [shape: f32[8,72], index: 1, kind: input, shape index: {}]
  %s2 = inlined_call_operand.vmem [shape: f32[8,1], index: 2, kind: input, shape index: {}]
  %s3 = inlined_call_operand.vmem [shape: f32[2,8,384], index: 3, kind: output, shape index: {}]
  %s4 = sld [smem:[#allocation0]]
  $region22: #{depthwise_separable_conv.1} parent=0
    _
  %s6 = ssub.s32 1, %s4
  %s7 = scalar_select 0, %s6, %s4
  // Predicated region
  $region2: #{depthwise_separable_conv.1} parent=0 // pred_check
    _
  $region3: #{depthwise_separable_conv.1} parent=0 // pred_check_branch
    %9 = sbr.rel (0) target = $region5
  $region4: #{depthwise_separable_conv.1} parent=0 // pred_region
    _
  $region5: #{depthwise_separable_conv.1} parent=0 // pred_fallthru
    _
  // Predicated region
  $region6: #{depthwise_separable_conv.1} parent=0 // pred_check
    _
  $region7: #{depthwise_separable_conv.1} parent=0 // pred_check_branch
    %11 = sbr.rel (0) target = $region9
  $region8: #{depthwise_separable_conv.1} parent=0 // pred_region
    _
  $region9: #{depthwise_separable_conv.1} parent=0 // pred_fallthru
    _
  // Predicated region
  $region10: #{depthwise_separable_conv.1} parent=0 // pred_check
    _
  $region11: #{depthwise_separable_conv.1} parent=0 // pred_check_branch
    %13 = sbr.rel (0) target = $region13
  $region12: #{depthwise_separable_conv.1} parent=0 // pred_region
    _
  $region13: #{depthwise_separable_conv.1} parent=0 // pred_fallthru
    _
  %v14 = vld [vmem:[%s0] sm:$0xff]
  %v15 = vld [vmem:[%s0 + $0x8] sm:$0xff]
  %v16 = vld [vmem:[%s0 + $0x10] sm:$0xff]
  %17 = vst [vmem:[#allocation2] sm:$0xff] %v14
  %18 = vst [vmem:[#allocation2 + $0x8] sm:$0xff] %v15
  %19 = vst [vmem:[#allocation2 + $0x10] sm:$0xff] %v16
  %s20 = scalar_lea.vmem %s0, 32
  %v21 = vld [vmem:[%s20] sm:$0xff]
  %v22 = vld [vmem:[%s20 + $0x8] sm:$0xff]
  %v23 = vld [vmem:[%s20 + $0x10] sm:$0xff]
  %24 = vst [vmem:[#allocation2 + $0x18] sm:$0xff] %v21
  %25 = vst [vmem:[#allocation2 + $0x20] sm:$0xff] %v22
  %26 = vst [vmem:[#allocation2 + $0x28] sm:$0xff] %v23
  %v27 = vld [vmem:[%s0] sm:$0xff]
  %v28 = vld [vmem:[%s0 + $0x8] sm:$0xff]
  %v29 = vld [vmem:[%s0 + $0x10] sm:$0xff]
  %v30 = vld [vmem:[%s0 + $0x18] sm:$0xff]
  %35 = vrot.lane.b32.xlu0 %v27, 127
  %v36 = vpop.permute.xlu0 %35
  %37 = vrot.lane.b32.xlu0 %v28, 127
  %v38 = vpop.permute.xlu0 %37
  %39 = vrot.lane.b32.xlu0 %v29, 127
  %v40 = vpop.permute.xlu0 %39
  %41 = vrot.lane.b32.xlu0 %v30, 127
  %v42 = vpop.permute.xlu0 %41
  %vm43 = vcmask 1039360
  %v44 = vsel %vm43, %v36, %v38
  %v45 = vsel %vm43, %v38, %v40
  %v46 = vsel %vm43, %v40, %v42
  %50 = vst [vmem:[#allocation2 + $0x30] sm:$0xff] %v44
  %51 = vst [vmem:[#allocation2 + $0x38] sm:$0xff] %v45
  %52 = vst [vmem:[#allocation2 + $0x40] sm:$0xff] %v46
  %v53 = vld [vmem:[%s20] sm:$0xff]
  %v54 = vld [vmem:[%s20 + $0x8] sm:$0xff]
  %v55 = vld [vmem:[%s20 + $0x10] sm:$0xff]
  %v56 = vld [vmem:[%s20 + $0x18] sm:$0xff]
  %61 = vrot.lane.b32.xlu0 %v53, 127
  %v62 = vpop.permute.xlu0 %61
  %63 = vrot.lane.b32.xlu0 %v54, 127
  %v64 = vpop.permute.xlu0 %63
  %65 = vrot.lane.b32.xlu0 %v55, 127
  %v66 = vpop.permute.xlu0 %65
  %67 = vrot.lane.b32.xlu0 %v56, 127
  %v68 = vpop.permute.xlu0 %67
  %v69 = vsel %vm43, %v62, %v64
  %v70 = vsel %vm43, %v64, %v66
  %v71 = vsel %vm43, %v66, %v68
  %75 = vst [vmem:[#allocation2 + $0x48] sm:$0xff] %v69
  %76 = vst [vmem:[#allocation2 + $0x50] sm:$0xff] %v70
  %77 = vst [vmem:[#allocation2 + $0x58] sm:$0xff] %v71
  %v78 = vld [vmem:[%s0] sm:$0xff]
  %v79 = vld [vmem:[%s0 + $0x8] sm:$0xff]
  %v80 = vld [vmem:[%s0 + $0x10] sm:$0xff]
  %v81 = vld [vmem:[%s0 + $0x18] sm:$0xff]
  %86 = vrot.lane.b32.xlu0 %v78, 126
  %v87 = vpop.permute.xlu0 %86
  %88 = vrot.lane.b32.xlu0 %v79, 126
  %v89 = vpop.permute.xlu0 %88
  %90 = vrot.lane.b32.xlu0 %v80, 126
  %v91 = vpop.permute.xlu0 %90
  %92 = vrot.lane.b32.xlu0 %v81, 126
  %v93 = vpop.permute.xlu0 %92
  %vm94 = vcmask 1031168
  %v95 = vsel %vm94, %v87, %v89
  %v96 = vsel %vm94, %v89, %v91
  %v97 = vsel %vm94, %v91, %v93
  %101 = vst [vmem:[#allocation2 + $0x60] sm:$0xff] %v95
  %102 = vst [vmem:[#allocation2 + $0x68] sm:$0xff] %v96
  %103 = vst [vmem:[#allocation2 + $0x70] sm:$0xff] %v97
  %v104 = vld [vmem:[%s20] sm:$0xff]
  %v105 = vld [vmem:[%s20 + $0x8] sm:$0xff]
  %v106 = vld [vmem:[%s20 + $0x10] sm:$0xff]
  %v107 = vld [vmem:[%s20 + $0x18] sm:$0xff]
  %112 = vrot.lane.b32.xlu0 %v104, 126
  %v113 = vpop.permute.xlu0 %112
  %114 = vrot.lane.b32.xlu0 %v105, 126
  %v115 = vpop.permute.xlu0 %114
  %116 = vrot.lane.b32.xlu0 %v106, 126
  %v117 = vpop.permute.xlu0 %116
  %118 = vrot.lane.b32.xlu0 %v107, 126
  %v119 = vpop.permute.xlu0 %118
  %v120 = vsel %vm94, %v113, %v115
  %v121 = vsel %vm94, %v115, %v117
  %v122 = vsel %vm94, %v117, %v119
  %126 = vst [vmem:[#allocation2 + $0x78] sm:$0xff] %v120
  %127 = vst [vmem:[#allocation2 + $0x80] sm:$0xff] %v121
  %128 = vst [vmem:[#allocation2 + $0x88] sm:$0xff] %v122
  %v129 = vld [vmem:[%s0] sm:$0xff]
  %v130 = vld [vmem:[%s0 + $0x8] sm:$0xff]
  %v131 = vld [vmem:[%s0 + $0x10] sm:$0xff]
  %v132 = vld [vmem:[%s0 + $0x18] sm:$0xff]
  %137 = vrot.lane.b32.xlu0 %v129, 104
  %v138 = vpop.permute.xlu0 %137
  %139 = vrot.lane.b32.xlu0 %v130, 104
  %v140 = vpop.permute.xlu0 %139
  %141 = vrot.lane.b32.xlu0 %v131, 104
  %v142 = vpop.permute.xlu0 %141
  %143 = vrot.lane.b32.xlu0 %v132, 104
  %v144 = vpop.permute.xlu0 %143
  %vm145 = vcmask 850944
  %v146 = vsel %vm145, %v138, %v140
  %v147 = vsel %vm145, %v140, %v142
  %v148 = vsel %vm145, %v142, %v144
  %152 = vst [vmem:[#allocation2 + $0x90] sm:$0xff] %v146
  %153 = vst [vmem:[#allocation2 + $0x98] sm:$0xff] %v147
  %154 = vst [vmem:[#allocation2 + $0xa0] sm:$0xff] %v148
  %v155 = vld [vmem:[%s20] sm:$0xff]
  %v156 = vld [vmem:[%s20 + $0x8] sm:$0xff]
  %v157 = vld [vmem:[%s20 + $0x10] sm:$0xff]
  %v158 = vld [vmem:[%s20 + $0x18] sm:$0xff]
  %163 = vrot.lane.b32.xlu0 %v155, 104
  %v164 = vpop.permute.xlu0 %163
  %165 = vrot.lane.b32.xlu0 %v156, 104
  %v166 = vpop.permute.xlu0 %165
  %167 = vrot.lane.b32.xlu0 %v157, 104
  %v168 = vpop.permute.xlu0 %167
  %169 = vrot.lane.b32.xlu0 %v158, 104
  %v170 = vpop.permute.xlu0 %169
  %v171 = vsel %vm145, %v164, %v166
  %v172 = vsel %vm145, %v166, %v168
  %v173 = vsel %vm145, %v168, %v170
  %177 = vst [vmem:[#allocation2 + $0xa8] sm:$0xff] %v171
  %178 = vst [vmem:[#allocation2 + $0xb0] sm:$0xff] %v172
  %179 = vst [vmem:[#allocation2 + $0xb8] sm:$0xff] %v173
  %v180 = vld [vmem:[%s0] sm:$0xff]
  %v181 = vld [vmem:[%s0 + $0x8] sm:$0xff]
  %v182 = vld [vmem:[%s0 + $0x10] sm:$0xff]
  %v183 = vld [vmem:[%s0 + $0x18] sm:$0xff]
  %188 = vrot.lane.b32.xlu0 %v180, 103
  %v189 = vpop.permute.xlu0 %188
  %190 = vrot.lane.b32.xlu0 %v181, 103
  %v191 = vpop.permute.xlu0 %190
  %192 = vrot.lane.b32.xlu0 %v182, 103
  %v193 = vpop.permute.xlu0 %192
  %194 = vrot.lane.b32.xlu0 %v183, 103
  %v195 = vpop.permute.xlu0 %194
  %vm196 = vcmask 842752
  %v197 = vsel %vm196, %v189, %v191
  %v198 = vsel %vm196, %v191, %v193
  %v199 = vsel %vm196, %v193, %v195
  %203 = vst [vmem:[#allocation2 + $0xc0] sm:$0xff] %v197
  %204 = vst [vmem:[#allocation2 + $0xc8] sm:$0xff] %v198
  %205 = vst [vmem:[#allocation2 + $0xd0] sm:$0xff] %v199
  %v206 = vld [vmem:[%s20] sm:$0xff]
  %v207 = vld [vmem:[%s20 + $0x8] sm:$0xff]
  %v208 = vld [vmem:[%s20 + $0x10] sm:$0xff]
  %v209 = vld [vmem:[%s20 + $0x18] sm:$0xff]
  %214 = vrot.lane.b32.xlu0 %v206, 103
  %v215 = vpop.permute.xlu0 %214
  %216 = vrot.lane.b32.xlu0 %v207, 103
  %v217 = vpop.permute.xlu0 %216
  %218 = vrot.lane.b32.xlu0 %v208, 103
  %v219 = vpop.permute.xlu0 %218
  %220 = vrot.lane.b32.xlu0 %v209, 103
  %v221 = vpop.permute.xlu0 %220
  %v222 = vsel %vm196, %v215, %v217
  %v223 = vsel %vm196, %v217, %v219
  %v224 = vsel %vm196, %v219, %v221
  %228 = vst [vmem:[#allocation2 + $0xd8] sm:$0xff] %v222
  %229 = vst [vmem:[#allocation2 + $0xe0] sm:$0xff] %v223
  %230 = vst [vmem:[#allocation2 + $0xe8] sm:$0xff] %v224
  %v231 = vld [vmem:[%s0] sm:$0xff]
  %v232 = vld [vmem:[%s0 + $0x8] sm:$0xff]
  %v233 = vld [vmem:[%s0 + $0x10] sm:$0xff]
  %v234 = vld [vmem:[%s0 + $0x18] sm:$0xff]
  %239 = vrot.lane.b32.xlu0 %v231, 102
  %v240 = vpop.permute.xlu0 %239
  %241 = vrot.lane.b32.xlu0 %v232, 102
  %v242 = vpop.permute.xlu0 %241
  %243 = vrot.lane.b32.xlu0 %v233, 102
  %v244 = vpop.permute.xlu0 %243
  %245 = vrot.lane.b32.xlu0 %v234, 102
  %v246 = vpop.permute.xlu0 %245
  %vm247 = vcmask 834560
  %v248 = vsel %vm247, %v240, %v242
  %v249 = vsel %vm247, %v242, %v244
  %v250 = vsel %vm247, %v244, %v246
  %254 = vst [vmem:[#allocation2 + $0xf0] sm:$0xff] %v248
  %255 = vst [vmem:[#allocation2 + $0xf8] sm:$0xff] %v249
  %256 = vst [vmem:[#allocation2 + $0x100] sm:$0xff] %v250
  %v257 = vld [vmem:[%s20] sm:$0xff]
  %v258 = vld [vmem:[%s20 + $0x8] sm:$0xff]
  %v259 = vld [vmem:[%s20 + $0x10] sm:$0xff]
  %v260 = vld [vmem:[%s20 + $0x18] sm:$0xff]
  %265 = vrot.lane.b32.xlu0 %v257, 102
  %v266 = vpop.permute.xlu0 %265
  %267 = vrot.lane.b32.xlu0 %v258, 102
  %v268 = vpop.permute.xlu0 %267
  %269 = vrot.lane.b32.xlu0 %v259, 102
  %v270 = vpop.permute.xlu0 %269
  %271 = vrot.lane.b32.xlu0 %v260, 102
  %v272 = vpop.permute.xlu0 %271
  %v273 = vsel %vm247, %v266, %v268
  %v274 = vsel %vm247, %v268, %v270
  %v275 = vsel %vm247, %v270, %v272
  %279 = vst [vmem:[#allocation2 + $0x108] sm:$0xff] %v273
  %280 = vst [vmem:[#allocation2 + $0x110] sm:$0xff] %v274
  %281 = vst [vmem:[#allocation2 + $0x118] sm:$0xff] %v275
  %v282 = vld [vmem:[%s0] sm:$0xff]
  %v283 = vld [vmem:[%s0 + $0x8] sm:$0xff]
  %v284 = vld [vmem:[%s0 + $0x10] sm:$0xff]
  %v285 = vld [vmem:[%s0 + $0x18] sm:$0xff]
  %290 = vrot.lane.b32.xlu0 %v282, 80
  %v291 = vpop.permute.xlu0 %290
  %292 = vrot.lane.b32.xlu0 %v283, 80
  %v293 = vpop.permute.xlu0 %292
  %294 = vrot.lane.b32.xlu0 %v284, 80
  %v295 = vpop.permute.xlu0 %294
  %296 = vrot.lane.b32.xlu0 %v285, 80
  %v297 = vpop.permute.xlu0 %296
  %vm298 = vcmask 654336
  %v299 = vsel %vm298, %v291, %v293
  %v300 = vsel %vm298, %v293, %v295
  %v301 = vsel %vm298, %v295, %v297
  %305 = vst [vmem:[#allocation2 + $0x120] sm:$0xff] %v299
  %306 = vst [vmem:[#allocation2 + $0x128] sm:$0xff] %v300
  %307 = vst [vmem:[#allocation2 + $0x130] sm:$0xff] %v301
  %v308 = vld [vmem:[%s20] sm:$0xff]
  %v309 = vld [vmem:[%s20 + $0x8] sm:$0xff]
  %v310 = vld [vmem:[%s20 + $0x10] sm:$0xff]
  %v311 = vld [vmem:[%s20 + $0x18] sm:$0xff]
  %316 = vrot.lane.b32.xlu0 %v308, 80
  %v317 = vpop.permute.xlu0 %316
  %318 = vrot.lane.b32.xlu0 %v309, 80
  %v319 = vpop.permute.xlu0 %318
  %320 = vrot.lane.b32.xlu0 %v310, 80
  %v321 = vpop.permute.xlu0 %320
  %322 = vrot.lane.b32.xlu0 %v311, 80
  %v323 = vpop.permute.xlu0 %322
  %v324 = vsel %vm298, %v317, %v319
  %v325 = vsel %vm298, %v319, %v321
  %v326 = vsel %vm298, %v321, %v323
  %330 = vst [vmem:[#allocation2 + $0x138] sm:$0xff] %v324
  %331 = vst [vmem:[#allocation2 + $0x140] sm:$0xff] %v325
  %332 = vst [vmem:[#allocation2 + $0x148] sm:$0xff] %v326
  %v333 = vld [vmem:[%s0] sm:$0xff]
  %v334 = vld [vmem:[%s0 + $0x8] sm:$0xff]
  %v335 = vld [vmem:[%s0 + $0x10] sm:$0xff]
  %v336 = vld [vmem:[%s0 + $0x18] sm:$0xff]
  %341 = vrot.lane.b32.xlu0 %v333, 79
  %v342 = vpop.permute.xlu0 %341
  %343 = vrot.lane.b32.xlu0 %v334, 79
  %v344 = vpop.permute.xlu0 %343
  %345 = vrot.lane.b32.xlu0 %v335, 79
  %v346 = vpop.permute.xlu0 %345
  %347 = vrot.lane.b32.xlu0 %v336, 79
  %v348 = vpop.permute.xlu0 %347
  %vm349 = vcmask 646144
  %v350 = vsel %vm349, %v342, %v344
  %v351 = vsel %vm349, %v344, %v346
  %v352 = vsel %vm349, %v346, %v348
  %356 = vst [vmem:[#allocation2 + $0x150] sm:$0xff] %v350
  %357 = vst [vmem:[#allocation2 + $0x158] sm:$0xff] %v351
  %358 = vst [vmem:[#allocation2 + $0x160] sm:$0xff] %v352
  %v359 = vld [vmem:[%s20] sm:$0xff]
  %v360 = vld [vmem:[%s20 + $0x8] sm:$0xff]
  %v361 = vld [vmem:[%s20 + $0x10] sm:$0xff]
  %v362 = vld [vmem:[%s20 + $0x18] sm:$0xff]
  %367 = vrot.lane.b32.xlu0 %v359, 79
  %v368 = vpop.permute.xlu0 %367
  %369 = vrot.lane.b32.xlu0 %v360, 79
  %v370 = vpop.permute.xlu0 %369
  %371 = vrot.lane.b32.xlu0 %v361, 79
  %v372 = vpop.permute.xlu0 %371
  %373 = vrot.lane.b32.xlu0 %v362, 79
  %v374 = vpop.permute.xlu0 %373
  %v375 = vsel %vm349, %v368, %v370
  %v376 = vsel %vm349, %v370, %v372
  %v377 = vsel %vm349, %v372, %v374
  %381 = vst [vmem:[#allocation2 + $0x168] sm:$0xff] %v375
  %382 = vst [vmem:[#allocation2 + $0x170] sm:$0xff] %v376
  %383 = vst [vmem:[#allocation2 + $0x178] sm:$0xff] %v377
  %v384 = vld [vmem:[%s0] sm:$0xff]
  %v385 = vld [vmem:[%s0 + $0x8] sm:$0xff]
  %v386 = vld [vmem:[%s0 + $0x10] sm:$0xff]
  %v387 = vld [vmem:[%s0 + $0x18] sm:$0xff]
  %392 = vrot.lane.b32.xlu0 %v384, 78
  %v393 = vpop.permute.xlu0 %392
  %394 = vrot.lane.b32.xlu0 %v385, 78
  %v395 = vpop.permute.xlu0 %394
  %396 = vrot.lane.b32.xlu0 %v386, 78
  %v397 = vpop.permute.xlu0 %396
  %398 = vrot.lane.b32.xlu0 %v387, 78
  %v399 = vpop.permute.xlu0 %398
  %vm400 = vcmask 637952
  %v401 = vsel %vm400, %v393, %v395
  %v402 = vsel %vm400, %v395, %v397
  %v403 = vsel %vm400, %v397, %v399
  %407 = vst [vmem:[#allocation2 + $0x180] sm:$0xff] %v401
  %408 = vst [vmem:[#allocation2 + $0x188] sm:$0xff] %v402
  %409 = vst [vmem:[#allocation2 + $0x190] sm:$0xff] %v403
  %v410 = vld [vmem:[%s20] sm:$0xff]
  %v411 = vld [vmem:[%s20 + $0x8] sm:$0xff]
  %v412 = vld [vmem:[%s20 + $0x10] sm:$0xff]
  %v413 = vld [vmem:[%s20 + $0x18] sm:$0xff]
  %418 = vrot.lane.b32.xlu0 %v410, 78
  %v419 = vpop.permute.xlu0 %418
  %420 = vrot.lane.b32.xlu0 %v411, 78
  %v421 = vpop.permute.xlu0 %420
  %422 = vrot.lane.b32.xlu0 %v412, 78
  %v423 = vpop.permute.xlu0 %422
  %424 = vrot.lane.b32.xlu0 %v413, 78
  %v425 = vpop.permute.xlu0 %424
  %v426 = vsel %vm400, %v419, %v421
  %v427 = vsel %vm400, %v421, %v423
  %v428 = vsel %vm400, %v423, %v425
  %432 = vst [vmem:[#allocation2 + $0x198] sm:$0xff] %v426
  %433 = vst [vmem:[#allocation2 + $0x1a0] sm:$0xff] %v427
  %434 = vst [vmem:[#allocation2 + $0x1a8] sm:$0xff] %v428
  %v435 = vld [vmem:[%s1] sm:$0xff]
  %v436 = vld [vmem:[#allocation2] sm:$0xff]
  %v437 = vld [vmem:[#allocation2 + $0x8] sm:$0xff]
  %v438 = vld [vmem:[#allocation2 + $0x10] sm:$0xff]
  %v439 = vld [vmem:[#allocation2 + $0x18] sm:$0xff]
  %v440 = vld [vmem:[#allocation2 + $0x20] sm:$0xff]
  %v441 = vld [vmem:[#allocation2 + $0x28] sm:$0xff]
  %v442 = vld [vmem:[#allocation2 + $0x30] sm:$0xff]
  %v443 = vld [vmem:[#allocation2 + $0x38] sm:$0xff]
  %v444 = vld [vmem:[#allocation2 + $0x40] sm:$0xff]
  %v445 = vld [vmem:[#allocation2 + $0x48] sm:$0xff]
  %v446 = vld [vmem:[#allocation2 + $0x50] sm:$0xff]
  %v447 = vld [vmem:[#allocation2 + $0x58] sm:$0xff]
  %v448 = vld [vmem:[#allocation2 + $0x60] sm:$0xff]
  %v449 = vld [vmem:[#allocation2 + $0x68] sm:$0xff]
  %v450 = vld [vmem:[#allocation2 + $0x70] sm:$0xff]
  %v451 = vld [vmem:[#allocation2 + $0x78] sm:$0xff]
  %v452 = vld [vmem:[#allocation2 + $0x80] sm:$0xff]
  %v453 = vld [vmem:[#allocation2 + $0x88] sm:$0xff]
  %v454 = vld [vmem:[#allocation2 + $0x90] sm:$0xff]
  %v455 = vld [vmem:[#allocation2 + $0x98] sm:$0xff]
  %v456 = vld [vmem:[#allocation2 + $0xa0] sm:$0xff]
  %v457 = vld [vmem:[#allocation2 + $0xa8] sm:$0xff]
  %v458 = vld [vmem:[#allocation2 + $0xb0] sm:$0xff]
  %v459 = vld [vmem:[#allocation2 + $0xb8] sm:$0xff]
  %v460 = vld [vmem:[#allocation2 + $0xc0] sm:$0xff]
  %v461 = vld [vmem:[#allocation2 + $0xc8] sm:$0xff]
  %v462 = vld [vmem:[#allocation2 + $0xd0] sm:$0xff]
  %v463 = vld [vmem:[#allocation2 + $0xd8] sm:$0xff]
  %v464 = vld [vmem:[#allocation2 + $0xe0] sm:$0xff]
  %v465 = vld [vmem:[#allocation2 + $0xe8] sm:$0xff]
  %v466 = vld [vmem:[#allocation2 + $0xf0] sm:$0xff]
  %v467 = vld [vmem:[#allocation2 + $0xf8] sm:$0xff]
  %v468 = vld [vmem:[#allocation2 + $0x100] sm:$0xff]
  %v469 = vld [vmem:[#allocation2 + $0x108] sm:$0xff]
  %v470 = vld [vmem:[#allocation2 + $0x110] sm:$0xff]
  %v471 = vld [vmem:[#allocation2 + $0x118] sm:$0xff]
  %v472 = vld [vmem:[#allocation2 + $0x120] sm:$0xff]
  %v473 = vld [vmem:[#allocation2 + $0x128] sm:$0xff]
  %v474 = vld [vmem:[#allocation2 + $0x130] sm:$0xff]
  %v475 = vld [vmem:[#allocation2 + $0x138] sm:$0xff]
  %v476 = vld [vmem:[#allocation2 + $0x140] sm:$0xff]
  %v477 = vld [vmem:[#allocation2 + $0x148] sm:$0xff]
  %v478 = vld [vmem:[#allocation2 + $0x150] sm:$0xff]
  %v479 = vld [vmem:[#allocation2 + $0x158] sm:$0xff]
  %v480 = vld [vmem:[#allocation2 + $0x160] sm:$0xff]
  %v481 = vld [vmem:[#allocation2 + $0x168] sm:$0xff]
  %v482 = vld [vmem:[#allocation2 + $0x170] sm:$0xff]
  %v483 = vld [vmem:[#allocation2 + $0x178] sm:$0xff]
  %v484 = vld [vmem:[#allocation2 + $0x180] sm:$0xff]
  %v485 = vld [vmem:[#allocation2 + $0x188] sm:$0xff]
  %v486 = vld [vmem:[#allocation2 + $0x190] sm:$0xff]
  %v487 = vld [vmem:[#allocation2 + $0x198] sm:$0xff]
  %v488 = vld [vmem:[#allocation2 + $0x1a0] sm:$0xff]
  %v489 = vld [vmem:[#allocation2 + $0x1a8] sm:$0xff]
  %v490 = vld [vmem:[%s2] sm:$0xff]
  %492 = vset.pattern.permute.xlu0 0
  %493 = vperm.xlu0 %492, %v490
  %v494 = vpop.permute.xlu0 %493
  %vm496 = vcmask 588800
  %v498 = vsel %vm496, %v435, 0
  %500 = vmatprep.subr.mxu0 %v437
  %501 = vmatpush1.msra.mxu0 %v436
  %502 = vmatprep.subr.mxu0 %v443
  %503 = vmatpush1.msra.mxu0 %v442
  %504 = vmatprep.subr.mxu0 %v449
  %505 = vmatpush1.msra.mxu0 %v448
  %506 = vmatprep.subr.mxu0 %v455
  %507 = vmatpush1.msra.mxu0 %v454
  %508 = vmatprep.subr.mxu0 %v461
  %509 = vmatpush1.msra.mxu0 %v460
  %510 = vmatprep.subr.mxu0 %v467
  %511 = vmatpush1.msra.mxu0 %v466
  %512 = vmatprep.subr.mxu0 %v473
  %513 = vmatpush1.msra.mxu0 %v472
  %514 = vmatprep.subr.mxu0 %v479
  %515 = vmatpush1.msra.mxu0 %v478
  %516 = vmatprep.subr.mxu0 %v485
  %517 = vmatpush1.msra.mxu0 %v484
  %518 = vmatprep.subr.mxu0 0.0
  %519 = vmatpush1.msra.mxu0 0.0
  %520 = vmatprep.subr.mxu0 0.0
  %521 = vmatpush1.msra.mxu0 0.0
  %522 = vmatprep.subr.mxu0 0.0
  %523 = vmatpush1.msra.mxu0 0.0
  %524 = vmatprep.subr.mxu0 0.0
  %525 = vmatpush1.msra.mxu0 0.0
  %526 = vmatprep.subr.mxu0 0.0
  %527 = vmatpush1.msra.mxu0 0.0
  %528 = vmatprep.subr.mxu0 0.0
  %529 = vmatpush1.msra.mxu0 0.0
  %530 = vmatprep.subr.mxu0 0.0
  %531 = vmatpush1.msra.mxu0 0.0
  %532 = vmatprep.subr.mxu0 0.0
  %533 = vmatpush1.msra.mxu0 0.0
  %534 = vmatprep.subr.mxu0 0.0
  %535 = vmatpush1.msra.mxu0 0.0
  %536 = vmatprep.subr.mxu0 0.0
  %537 = vmatpush1.msra.mxu0 0.0
  %538 = vmatprep.subr.mxu0 0.0
  %539 = vmatpush1.msra.mxu0 0.0
  %540 = vmatprep.subr.mxu0 0.0
  %541 = vmatpush1.msra.mxu0 0.0
  %542 = vmatprep.subr.mxu0 0.0
  %543 = vmatpush1.msra.mxu0 0.0
  %544 = vmatprep.subr.mxu0 0.0
  %545 = vmatpush1.msra.mxu0 0.0
  %546 = vmatprep.subr.mxu0 0.0
  %547 = vmatpush1.msra.mxu0 0.0
  %548 = vmatprep.subr.mxu0 0.0
  %549 = vmatpush1.msra.mxu0 0.0
  %550 = vmatprep.subr.mxu0 0.0
  %551 = vmatpush1.msra.mxu0 0.0
  %552 = vmatprep.subr.mxu0 0.0
  %553 = vmatpush1.msra.mxu0 0.0
  %554 = vmatprep.subr.mxu0 0.0
  %555 = vmatpush1.msra.mxu0 0.0
  %556 = vmatprep.subr.mxu0 0.0
  %557 = vmatpush1.msra.mxu0 0.0
  %558 = vmatprep.subr.mxu0 0.0
  %559 = vmatpush1.msra.mxu0 0.0
  %560 = vmatprep.subr.mxu0 0.0
  %561 = vmatpush1.msra.mxu0 0.0
  %562 = vmatprep.subr.mxu0 0.0
  %563 = vmatpush1.msra.mxu0 0.0
  %564 = vmatprep.mubr.f32.mxu0 0.0
  %565 = vmatmul.mubr.f32.gmra.mrb[0].mxu0 %v498
  %v566 = vpop.f32.mrb[0].mxu0
  %v567 = vadd.f32 %v494, %v566
  %v568 = vpop.f32.mrb[0].mxu0
  %v569 = vadd.f32 %v494, %v568
  %570 = vdwg.mxu0
  %571 = vmatprep.subr.mxu0 %v439
  %572 = vmatpush1.msra.mxu0 %v438
  %573 = vmatprep.subr.mxu0 %v445
  %574 = vmatpush1.msra.mxu0 %v444
  %575 = vmatprep.subr.mxu0 %v451
  %576 = vmatpush1.msra.mxu0 %v450
  %577 = vmatprep.subr.mxu0 %v457
  %578 = vmatpush1.msra.mxu0 %v456
  %579 = vmatprep.subr.mxu0 %v463
  %580 = vmatpush1.msra.mxu0 %v462
  %581 = vmatprep.subr.mxu0 %v469
  %582 = vmatpush1.msra.mxu0 %v468
  %583 = vmatprep.subr.mxu0 %v475
  %584 = vmatpush1.msra.mxu0 %v474
  %585 = vmatprep.subr.mxu0 %v481
  %586 = vmatpush1.msra.mxu0 %v480
  %587 = vmatprep.subr.mxu0 %v487
  %588 = vmatpush1.msra.mxu0 %v486
  %589 = vmatprep.subr.mxu0 0.0
  %590 = vmatpush1.msra.mxu0 0.0
  %591 = vmatprep.subr.mxu0 0.0
  %592 = vmatpush1.msra.mxu0 0.0
  %593 = vmatprep.subr.mxu0 0.0
  %594 = vmatpush1.msra.mxu0 0.0
  %595 = vmatprep.subr.mxu0 0.0
  %596 = vmatpush1.msra.mxu0 0.0
  %597 = vmatprep.subr.mxu0 0.0
  %598 = vmatpush1.msra.mxu0 0.0
  %599 = vmatprep.subr.mxu0 0.0
  %600 = vmatpush1.msra.mxu0 0.0
  %601 = vmatprep.subr.mxu0 0.0
  %602 = vmatpush1.msra.mxu0 0.0
  %603 = vmatprep.subr.mxu0 0.0
  %604 = vmatpush1.msra.mxu0 0.0
  %605 = vmatprep.subr.mxu0 0.0
  %606 = vmatpush1.msra.mxu0 0.0
  %607 = vmatprep.subr.mxu0 0.0
  %608 = vmatpush1.msra.mxu0 0.0
  %609 = vmatprep.subr.mxu0 0.0
  %610 = vmatpush1.msra.mxu0 0.0
  %611 = vmatprep.subr.mxu0 0.0
  %612 = vmatpush1.msra.mxu0 0.0
  %613 = vmatprep.subr.mxu0 0.0
  %614 = vmatpush1.msra.mxu0 0.0
  %615 = vmatprep.subr.mxu0 0.0
  %616 = vmatpush1.msra.mxu0 0.0
  %617 = vmatprep.subr.mxu0 0.0
  %618 = vmatpush1.msra.mxu0 0.0
  %619 = vmatprep.subr.mxu0 0.0
  %620 = vmatpush1.msra.mxu0 0.0
  %621 = vmatprep.subr.mxu0 0.0
  %622 = vmatpush1.msra.mxu0 0.0
  %623 = vmatprep.subr.mxu0 0.0
  %624 = vmatpush1.msra.mxu0 0.0
  %625 = vmatprep.subr.mxu0 0.0
  %626 = vmatpush1.msra.mxu0 0.0
  %627 = vmatprep.subr.mxu0 0.0
  %628 = vmatpush1.msra.mxu0 0.0
  %629 = vmatprep.subr.mxu0 0.0
  %630 = vmatpush1.msra.mxu0 0.0
  %631 = vmatprep.subr.mxu0 0.0
  %632 = vmatpush1.msra.mxu0 0.0
  %633 = vmatprep.subr.mxu0 0.0
  %634 = vmatpush1.msra.mxu0 0.0
  %635 = vmatprep.mubr.f32.mxu0 0.0
  %636 = vmatmul.mubr.f32.gmra.mrb[0].mxu0 %v498
  %v637 = vpop.f32.mrb[0].mxu0
  %v638 = vadd.f32 %v494, %v637
  %v639 = vpop.f32.mrb[0].mxu0
  %v640 = vadd.f32 %v494, %v639
  %641 = vdwg.mxu0
  %642 = vmatprep.subr.mxu0 %v441
  %643 = vmatpush1.msra.mxu0 %v440
  %644 = vmatprep.subr.mxu0 %v447
  %645 = vmatpush1.msra.mxu0 %v446
  %646 = vmatprep.subr.mxu0 %v453
  %647 = vmatpush1.msra.mxu0 %v452
  %648 = vmatprep.subr.mxu0 %v459
  %649 = vmatpush1.msra.mxu0 %v458
  %650 = vmatprep.subr.mxu0 %v465
  %651 = vmatpush1.msra.mxu0 %v464
  %652 = vmatprep.subr.mxu0 %v471
  %653 = vmatpush1.msra.mxu0 %v470
  %654 = vmatprep.subr.mxu0 %v477
  %655 = vmatpush1.msra.mxu0 %v476
  %656 = vmatprep.subr.mxu0 %v483
  %657 = vmatpush1.msra.mxu0 %v482
  %658 = vmatprep.subr.mxu0 %v489
  %659 = vmatpush1.msra.mxu0 %v488
  %660 = vmatprep.subr.mxu0 0.0
  %661 = vmatpush1.msra.mxu0 0.0
  %662 = vmatprep.subr.mxu0 0.0
  %663 = vmatpush1.msra.mxu0 0.0
  %664 = vmatprep.subr.mxu0 0.0
  %665 = vmatpush1.msra.mxu0 0.0
  %666 = vmatprep.subr.mxu0 0.0
  %667 = vmatpush1.msra.mxu0 0.0
  %668 = vmatprep.subr.mxu0 0.0
  %669 = vmatpush1.msra.mxu0 0.0
  %670 = vmatprep.subr.mxu0 0.0
  %671 = vmatpush1.msra.mxu0 0.0
  %672 = vmatprep.subr.mxu0 0.0
  %673 = vmatpush1.msra.mxu0 0.0
  %674 = vmatprep.subr.mxu0 0.0
  %675 = vmatpush1.msra.mxu0 0.0
  %676 = vmatprep.subr.mxu0 0.0
  %677 = vmatpush1.msra.mxu0 0.0
  %678 = vmatprep.subr.mxu0 0.0
  %679 = vmatpush1.msra.mxu0 0.0
  %680 = vmatprep.subr.mxu0 0.0
  %681 = vmatpush1.msra.mxu0 0.0
  %682 = vmatprep.subr.mxu0 0.0
  %683 = vmatpush1.msra.mxu0 0.0
  %684 = vmatprep.subr.mxu0 0.0
  %685 = vmatpush1.msra.mxu0 0.0
  %686 = vmatprep.subr.mxu0 0.0
  %687 = vmatpush1.msra.mxu0 0.0
  %688 = vmatprep.subr.mxu0 0.0
  %689 = vmatpush1.msra.mxu0 0.0
  %690 = vmatprep.subr.mxu0 0.0
  %691 = vmatpush1.msra.mxu0 0.0
  %692 = vmatprep.subr.mxu0 0.0
  %693 = vmatpush1.msra.mxu0 0.0
  %694 = vmatprep.subr.mxu0 0.0
  %695 = vmatpush1.msra.mxu0 0.0
  %696 = vmatprep.subr.mxu0 0.0
  %697 = vmatpush1.msra.mxu0 0.0
  %698 = vmatprep.subr.mxu0 0.0
  %699 = vmatpush1.msra.mxu0 0.0
  %700 = vmatprep.subr.mxu0 0.0
  %701 = vmatpush1.msra.mxu0 0.0
  %702 = vmatprep.subr.mxu0 0.0
  %703 = vmatpush1.msra.mxu0 0.0
  %704 = vmatprep.subr.mxu0 0.0
  %705 = vmatpush1.msra.mxu0 0.0
  %706 = vmatprep.mubr.f32.mxu0 0.0
  %707 = vmatmul.mubr.f32.gmra.mrb[0].mxu0 %v498
  %v708 = vpop.f32.mrb[0].mxu0
  %v709 = vadd.f32 %v494, %v708
  %v710 = vpop.f32.mrb[0].mxu0
  %v711 = vadd.f32 %v494, %v710
  %712 = vdwg.mxu0
  %713 = vst [vmem:[%s3] sm:$0xff] %v567
  %714 = vst [vmem:[%s3 + $0x8] sm:$0xff] %v569
  %715 = vst [vmem:[%s3 + $0x10] sm:$0xff] %v638
  %s716 = scalar_lea.vmem %s3, 24
  %717 = vst [vmem:[%s716] sm:$0xff] %v640
  %718 = vst [vmem:[%s716 + $0x8] sm:$0xff] %v709
  %719 = vst [vmem:[%s716 + $0x10] sm:$0xff] %v711
  // Predicated region
  $region14: #{depthwise_separable_conv.1} parent=0 // pred_check
    _
  $region15: #{depthwise_separable_conv.1} parent=0 // pred_check_branch
    %721 = sbr.rel (0) target = $region17
  $region16: #{depthwise_separable_conv.1} parent=0 // pred_region
    _
  $region17: #{depthwise_separable_conv.1} parent=0 // pred_fallthru
    _
  // Predicated region
  $region18: #{depthwise_separable_conv.1} parent=0 // pred_check
    _
  $region19: #{depthwise_separable_conv.1} parent=0 // pred_check_branch
    %723 = sbr.rel (0) target = $region21
  $region20: #{depthwise_separable_conv.1} parent=0 // pred_region
    _
  $region21: #{depthwise_separable_conv.1} parent=0 // pred_fallthru
    _

</llo_original>
